<compile_context>
chip_gen: v5e
topology: v5e:2x2
jax: 0.10.0
libtpu: 0.0.40
codegen_flags: <defaults>
</compile_context>

<pallas_src>
import math

import jax
import jax.numpy as jnp
from jax.experimental import pallas as pl
from jax.experimental.pallas import tpu as pltpu


def _round_up(x, m):
    return ((x + m - 1) // m) * m


# ---------------- kernel 1: layer-1 projection (source-side D^-1/2 folded in) ----------------
def _proj1_kernel(x_ref, w1_ref, dinv_ref, hp1_ref):
    # hp = X @ W1 on the MXU (bf16 operands, f32 accumulate);
    # fold the source-side D^-1/2 scaling into the stored projection.
    hp = jnp.dot(x_ref[...], w1_ref[...], preferred_element_type=jnp.float32)
    hp1_ref[...] = (dinv_ref[...] * hp).astype(jnp.bfloat16)


# -------- kernel 2: K-tiled layer-1 aggregation + bias + PReLU, fused layer-2 projection --------
def _agg1_proj2_kernel(adj_ref, hp1_ref, dinv_ref, w2_ref, b1_ref, p1_ref,
                       hp2_ref, acc_ref):
    k = pl.program_id(1)

    @pl.when(k == 0)
    def _():
        acc_ref[...] = jnp.zeros_like(acc_ref)

    # acc_i += sum_{j in K-tile} A_hat[i, j] * (D^-1/2[j] * x_j W1)
    acc_ref[...] += jnp.dot(adj_ref[...], hp1_ref[...],
                            preferred_element_type=jnp.float32)

    @pl.when(k == pl.num_programs(1) - 1)
    def _():
        h1 = dinv_ref[...] * acc_ref[...] + b1_ref[...]
        h1 = jnp.where(h1 >= 0.0, h1, p1_ref[...] * h1)     # per-channel PReLU (f32)
        # Layer-2 projection (and its source-side D^-1/2) fused on the same row tile.
        hp2 = jnp.dot(h1.astype(jnp.bfloat16), w2_ref[...],
                      preferred_element_type=jnp.float32)
        hp2_ref[...] = (dinv_ref[...] * hp2).astype(jnp.bfloat16)


# ---------------- kernel 3: K-tiled layer-2 aggregation + bias + PReLU ----------------
def _agg2_kernel(adj_ref, hp2_ref, dinv_ref, b2_ref, p2_ref, out_ref, acc_ref):
    k = pl.program_id(1)

    @pl.when(k == 0)
    def _():
        acc_ref[...] = jnp.zeros_like(acc_ref)

    acc_ref[...] += jnp.dot(adj_ref[...], hp2_ref[...],
                            preferred_element_type=jnp.float32)

    @pl.when(k == pl.num_programs(1) - 1)
    def _():
        h2 = dinv_ref[...] * acc_ref[...] + b2_ref[...]
        out_ref[...] = jnp.where(h2 >= 0.0, h2, p2_ref[...] * h2)


# ------------------------------ wrapper ------------------------------
def gcn_forward(x, edge_index, node_id, params, hidden_dims, add, *,
                tile_m=256, tile_k=512):
    """GCN.forward(x, edge_index, id).  Returns (N, out_dim) float32."""
    in_dim, num_hidden, out_dim = hidden_dims
    N = x.shape[0]
    f_in = in_dim + add
    F = _round_up(f_in, 128)                # lane-dense input width
    H = _round_up(num_hidden, 128)          # lane-dense hidden width
    O = _round_up(out_dim, 128)             # lane-dense output width
    TM = tile_m                             # target-node (row) tile
    TK = tile_k                             # source-node (reduction) tile
    N_pad = _round_up(max(N, 1), TM * TK // math.gcd(TM, TK))

    # ---- host-side glue: id column + dense adjacency A_hat[target, source] ----
    # TODO(synk): edge_index -> dense adjacency is host-side jnp glue; a fully
    # in-kernel CSR gather (scalar-prefetched row pointers + manual DMA of hp
    # rows from an ANY-space ref) would avoid the O(N^2) adjacency entirely.
    id_col = jnp.full((N, add), jnp.float32(node_id))
    x_cat = jnp.concatenate([x.astype(jnp.float32), id_col], axis=1)   # (N, f_in)

    src, dst = edge_index[0], edge_index[1]
    non_loop = (src != dst).astype(jnp.float32)
    adj = jnp.zeros((N, N), jnp.float32).at[dst, src].add(non_loop)    # multiplicities
    diag = jnp.arange(N)
    # add_remaining_self_loops: every node gets exactly one self-loop of weight 1
    adj = adj.at[diag, diag].set(1.0)

    # Degree normalization computed host-side (falls out of the same scatter) —
    # the adjacency no longer needs to be streamed through kernel 1.
    deg = adj.sum(axis=1)                                              # (N,)
    dinv = jnp.where(deg > 0.0, 1.0 / jnp.sqrt(deg), 0.0)

    # pad to the row-tiled / lane-dense layout; padded nodes get dinv = 0
    x_p = jnp.zeros((N_pad, F), jnp.bfloat16).at[:N, :f_in].set(
        x_cat.astype(jnp.bfloat16))
    adj_p = jnp.zeros((N_pad, N_pad), jnp.bfloat16).at[:N, :N].set(
        adj.astype(jnp.bfloat16))
    dinv_p = jnp.zeros((N_pad, 1), jnp.float32).at[:N, 0].set(dinv)

    def pad2(a, rows, cols, dtype):
        buf = jnp.zeros((rows, cols), dtype)
        return buf.at[:a.shape[0], :a.shape[1]].set(a.astype(dtype))

    w1 = pad2(params["w1"], F, H, jnp.bfloat16)
    b1 = pad2(params["bias1"][None, :], 1, H, jnp.float32)
    p1 = pad2(params["prelu1"][None, :], 1, H, jnp.float32)
    w2 = pad2(params["w2"], H, O, jnp.bfloat16)
    b2 = pad2(params["bias2"][None, :], 1, O, jnp.float32)
    p2 = pad2(params["prelu2"][None, :], 1, O, jnp.float32)

    cparams_1d = pltpu.CompilerParams(
        dimension_semantics=("parallel",),
        vmem_limit_bytes=48 * 1024 * 1024,
    )
    cparams_2d = pltpu.CompilerParams(
        dimension_semantics=("parallel", "arbitrary"),
        vmem_limit_bytes=48 * 1024 * 1024,
    )

    # ---- kernel 1: scaled layer-1 projection (row-tiled, no adjacency) ----
    row1 = lambda i: (i, 0)
    rep1 = lambda i: (0, 0)
    hp1 = pl.pallas_call(
        _proj1_kernel,
        grid=(N_pad // TM,),
        in_specs=[
            pl.BlockSpec((TM, F), row1),
            pl.BlockSpec((F, H), rep1),
            pl.BlockSpec((TM, 1), row1),
        ],
        out_specs=pl.BlockSpec((TM, H), row1),
        out_shape=jax.ShapeDtypeStruct((N_pad, H), jnp.bfloat16),
        compiler_params=cparams_1d,
    )(x_p, w1, dinv_p)

    # Shared index maps for the K-tiled aggregation kernels.
    adj_map = lambda i, k: (i, k)        # (TM, TK) adjacency tile
    src_map = lambda i, k: (k, 0)        # (TK, H/O) source-feature tile
    row_map = lambda i, k: (i, 0)        # row-resident across the K axis
    rep_map = lambda i, k: (0, 0)        # resident parameters

    # ---- kernel 2: layer-1 aggregation + PReLU, fused layer-2 projection ----
    hp2 = pl.pallas_call(
        _agg1_proj2_kernel,
        grid=(N_pad // TM, N_pad // TK),
        in_specs=[
            pl.BlockSpec((TM, TK), adj_map),
            pl.BlockSpec((TK, H), src_map),
            pl.BlockSpec((TM, 1), row_map),
            pl.BlockSpec((H, O), rep_map),
            pl.BlockSpec((1, H), rep_map),
            pl.BlockSpec((1, H), rep_map),
        ],
        out_specs=pl.BlockSpec((TM, O), row_map),
        out_shape=jax.ShapeDtypeStruct((N_pad, O), jnp.bfloat16),
        scratch_shapes=[pltpu.VMEM((TM, H), jnp.float32)],
        compiler_params=cparams_2d,
    )(adj_p, hp1, dinv_p, w2, b1, p1)

    # ---- kernel 3: layer-2 aggregation + bias + PReLU (lane-dense output) ----
    out = pl.pallas_call(
        _agg2_kernel,
        grid=(N_pad // TM, N_pad // TK),
        in_specs=[
            pl.BlockSpec((TM, TK), adj_map),
            pl.BlockSpec((TK, O), src_map),
            pl.BlockSpec((TM, 1), row_map),
            pl.BlockSpec((1, O), rep_map),
            pl.BlockSpec((1, O), rep_map),
        ],
        out_specs=pl.BlockSpec((TM, O), row_map),
        out_shape=jax.ShapeDtypeStruct((N_pad, O), jnp.float32),
        scratch_shapes=[pltpu.VMEM((TM, O), jnp.float32)],
        compiler_params=cparams_2d,
    )(adj_p, hp2, dinv_p, b2, p2)

    return out[:N, :out_dim]


def init_gcn_params(key, add, hidden_dims):
    """Deterministic init matching GCNConv (glorot W, zero bias) / nn.PReLU(C)."""
    in_dim, num_hidden, out_dim = hidden_dims
    f_in = in_dim + add
    k1, k2 = jax.random.split(key)

    def glorot(k, shape):
        limit = jnp.sqrt(6.0 / (shape[0] + shape[1]))
        return jax.random.uniform(k, shape, jnp.float32, -limit, limit)

    return {
        "w1": glorot(k1, (f_in, num_hidden)),
        "bias1": jnp.zeros((num_hidden,), jnp.float32),
        "prelu1": jnp.full((num_hidden,), 0.25, jnp.float32),   # nn.PReLU(num_hidden)
        "w2": glorot(k2, (num_hidden, out_dim)),
        "bias2": jnp.zeros((out_dim,), jnp.float32),
        "prelu2": jnp.full((out_dim,), 0.25, jnp.float32),      # nn.PReLU(out_dim)
    }


if __name__ == "__main__":
    key = jax.random.PRNGKey(0)
    N, in_dim, add = 16, 4, 1
    hidden_dims = (in_dim, 32, 16)        # (in_dim, num_hidden, out_dim)
    num_edges = 40
    kx, ke1, ke2, kp = jax.random.split(key, 4)

    # node features and a random graph (edge_index row 0 = source, row 1 = target)
    x = jax.random.normal(kx, (N, in_dim), jnp.float32)
    src = jax.random.randint(ke1, (num_edges,), 0, N)
    dst = jax.random.randint(ke2, (num_edges,), 0, N)
    edge_index = jnp.stack([src, dst], axis=0)
    node_id = 3.0                          # the scalar `id` argument

    params = init_gcn_params(kp, add, hidden_dims)
    out = gcn_forward(x, edge_index, node_id, params, hidden_dims, add)
    out = jax.block_until_ready(out)

    # ---- pure-JAX f32 reference (loose tolerance: kernel uses bf16 MXU operands) ----
    x_cat = jnp.concatenate([x, jnp.full((N, add), node_id, jnp.float32)], axis=1)
    adj = jnp.zeros((N, N), jnp.float32)
    adj = adj.at[dst, src].add((src != dst).astype(jnp.float32))
    adj = adj.at[jnp.arange(N), jnp.arange(N)].set(1.0)
    dinv = 1.0 / jnp.sqrt(adj.sum(axis=1))
    a_norm = dinv[:, None] * adj * dinv[None, :]

    def prelu(v, w):
        return jnp.where(v >= 0, v, w * v)

    h1 = prelu(a_norm @ (x_cat @ params["w1"]) + params["bias1"], params["prelu1"])
    ref = prelu(a_norm @ (h1 @ params["w2"]) + params["bias2"], params["prelu2"])

    assert out.shape == (N, hidden_dims[2]), out.shape
    assert bool(jnp.all(jnp.isfinite(out)))
    assert bool(jnp.allclose(out, ref, atol=1e-1, rtol=1e-1)), float(
        jnp.max(jnp.abs(out - ref)))
    print("KERNEL_OK")
</pallas_src>

<mosaic_0001>
module attributes {stable_mosaic.version = 11 : i64} {
  func.func @_proj1_kernel(%arg0: i32, %arg1: memref<256x128xbf16, #tpu.memory_space<vmem>>, %arg2: memref<128x128xbf16, #tpu.memory_space<vmem>>, %arg3: memref<256x1xf32, #tpu.memory_space<vmem>>, %arg4: memref<256x128xbf16, #tpu.memory_space<vmem>>) attributes {dimension_semantics = [#tpu.dimension_semantics<parallel>], iteration_bounds = array<i64: 2>, scalar_prefetch = 0 : i64, scratch_operands = 0 : i64, tpu.core_type = #tpu.core_type<tc>, window_params = [{transform_indices = @transform_0, window_bounds = array<i64: 256, 128>}, {pipeline_mode = #tpu.pipeline_mode<synchronous>, transform_indices = @transform_1, window_bounds = array<i64: 128, 128>}, {transform_indices = @transform_2, window_bounds = array<i64: 256, 1>}, {transform_indices = @transform_3, window_bounds = array<i64: 256, 128>}]} {
    %c0 = arith.constant 0 : index
    %c0_0 = arith.constant 0 : index
    %0 = vector.load %arg1[%c0, %c0_0] : memref<256x128xbf16, #tpu.memory_space<vmem>>, vector<256x128xbf16>
    %c0_1 = arith.constant 0 : index
    %c0_2 = arith.constant 0 : index
    %1 = vector.load %arg2[%c0_1, %c0_2] : memref<128x128xbf16, #tpu.memory_space<vmem>>, vector<128x128xbf16>
    %cst = arith.constant dense<0.000000e+00> : vector<256x128xf32>
    %2 = tpu.matmul %0, %1, %cst {dimension_numbers = #tpu.dot_dimension_numbers<[1], [0], [0], [1], [0, 0, 1, 1], [], []>} : vector<256x128xbf16>, vector<128x128xbf16>, vector<256x128xf32> -> vector<256x128xf32>
    %c0_3 = arith.constant 0 : index
    %c0_4 = arith.constant 0 : index
    %3 = vector.load %arg3[%c0_3, %c0_4] : memref<256x1xf32, #tpu.memory_space<vmem>>, vector<256x1xf32>
    %4 = vector.broadcast %3 : vector<256x1xf32> to vector<256x128xf32>
    %5 = arith.mulf %4, %2 : vector<256x128xf32>
    %6 = arith.truncf %5 : vector<256x128xf32> to vector<256x128xbf16>
    %c0_5 = arith.constant 0 : index
    %c0_6 = arith.constant 0 : index
    %7 = vector.load %arg4[%c0_5, %c0_6] : memref<256x128xbf16, #tpu.memory_space<vmem>>, vector<256x128xbf16>
    tpu.vector_store %arg4[%c0_5, %c0_6], %6 {strides = array<i32>} : memref<256x128xbf16, #tpu.memory_space<vmem>>, vector<256x128xbf16>,
    return
  }
  func.func @transform_0(%arg0: i32) -> (i32, i32) {
    %c0_i32 = arith.constant 0 : i32
    %c0_i32_0 = arith.constant 0 : i32
    return %arg0, %c0_i32 : i32, i32
  }
  func.func @transform_1(%arg0: i32) -> (i32, i32) {
    %c0_i32 = arith.constant 0 : i32
    %c0_i32_0 = arith.constant 0 : i32
    %c0_i32_1 = arith.constant 0 : i32
    return %c0_i32, %c0_i32_0 : i32, i32
  }
  func.func @transform_2(%arg0: i32) -> (i32, i32) {
    %c0_i32 = arith.constant 0 : i32
    %c0_i32_0 = arith.constant 0 : i32
    return %arg0, %c0_i32 : i32, i32
  }
  func.func @transform_3(%arg0: i32) -> (i32, i32) {
    %c0_i32 = arith.constant 0 : i32
    %c0_i32_0 = arith.constant 0 : i32
    return %arg0, %c0_i32 : i32, i32
  }
}

</mosaic_0001>

<llo_original>
// kernel: tpu_custom_call.1
$region0: #{tpu_custom_call.1}
  #allocation0 [shape = 'u32[]', space=smem, size = 0x4, offset = 0x4, fixed_abs, tag = 'smem constant byte address 0x4 - core index']
  #allocation1 [shape = 'u32[72,128]{1,0:T(1,128)}', space=vmem, size = 0x9000, scoped, tag = 'internal scratch']
  %s0 = inlined_call_operand.vmem [shape: bf16[512,128], index: 0, kind: input, shape index: {}]
  %s1 = inlined_call_operand.vmem [shape: bf16[128,128], index: 1, kind: input, shape index: {}]
  %s2 = inlined_call_operand.vmem [shape: f32[512,1], index: 2, kind: input, shape index: {}]
  %s3 = inlined_call_operand.hbm [shape: bf16[512,128], index: 3, kind: output, shape index: {}]
  %s4 = sld [smem:[#allocation0]]
  $region45: #{tpu_custom_call.1} parent=0
    _
  %s6 = ssub.s32 1, %s4
  %s7 = scalar_select 0, %s6, %s4
  $region1: #{tpu_custom_call.1} parent=0
    #allocation2 [shape = 'u8[131072]{0}', space=vmem, size = 0x20000, scoped, tag = 'output window, operand 0']
    #allocation3 [shape = 's32[2]{0}', space=sflag, size = 0x8, scoped, tag = 'scoped memory for tpu_custom_call.1']
    %8 = vsyncpa [#allocation3], 0
    %s9 = scalar_lea.sflag [#allocation3], 1
    %10 = vsyncpa %s9, 0
    loop: start=0, step=1, limit=4
    $region2: #{tpu_custom_call.1} parent=1 // loop_pre_header
      _
    $region3: #{tpu_custom_call.1} parent=1 // loop_header
      %s12 = sphi 0, %s16
      %p13 = scmp.ge.s32.totalorder %s12, 4
      %s22 = sphi 0, %s24
      %s25 = sphi 0, %s22
      %s26 = sphi 0, %s25
      %s42 = sphi 0, %s26
      %s46 = sphi 0, %s46
      %s48 = sphi 0, %s46
      %s49 = sphi 0, %s48
      %s63 = sphi 0, %s49
      %s69 = sphi 0, %s71
      %s72 = sphi 0, %s69
      %s73 = sphi 0, %s72
      %s89 = sphi 0, %s73
      %s95 = sphi 0, %s97
      %s98 = sphi 0, %s95
      %s99 = sphi 0, %s98
      %s115 = sphi 0, %s99
    $region4: #{tpu_custom_call.1} parent=1 // loop_header_branch
      %15 = sbr.rel (%p13) target = $region8
    $region5: #{tpu_custom_call.1} parent=1 // loop_body
      %s17 = ssub.s32 %s12, 1
      %s18 = ssub.s32 %s12, 2
      %s19 = sadd.s32 %s12, 1
      %s20 = ssub.s32 %s12, %s19
      %p21 = scmp.eq.s32.totalorder %s20, 0
      %s23 = sadd.s32 %s22, 1
      %s24 = scalar_select %p21, %s22, %s23
      %p27 = pneg %p21
      %p28 = scmp.eq.s32.totalorder %s12, 1
      %p29 = por %p27, %p28
      %p30 = scmp.ne.s32.totalorder %s22, %s25
      %p31 = scmp.eq.s32.totalorder %s12, 0
      %p32 = por %p30, %p31
      %p33 = scmp.ne.s32.totalorder %s22, %s25
      %p34 = scmp.eq.s32.totalorder %s17, 1
      %p35 = por %p33, %p34
      %p36 = scmp.ne.s32.totalorder %s25, %s26
      %p37 = scmp.eq.s32.totalorder %s17, 0
      %p38 = por %p36, %p37
      %p39 = scmp.ne.s32.totalorder %s25, %s26
      %p40 = scmp.eq.s32.totalorder %s18, 1
      %p41 = por %p39, %p40
      %p43 = scmp.ne.s32.totalorder %s26, %s42
      %p44 = scmp.eq.s32.totalorder %s18, 0
      %p45 = por %p43, %p44
      %s47 = sadd.s32 %s46, 1
      %p50 = scmp.eq.s32.totalorder %s12, 1
      %p51 = scmp.ne.s32.totalorder %s46, %s48
      %p52 = scmp.eq.s32.totalorder %s12, 0
      %p53 = por %p51, %p52
      %p54 = scmp.ne.s32.totalorder %s46, %s48
      %p55 = scmp.eq.s32.totalorder %s17, 1
      %p56 = por %p54, %p55
      %p57 = scmp.ne.s32.totalorder %s48, %s49
      %p58 = scmp.eq.s32.totalorder %s17, 0
      %p59 = por %p57, %p58
      %p60 = scmp.ne.s32.totalorder %s48, %s49
      %p61 = scmp.eq.s32.totalorder %s18, 1
      %p62 = por %p60, %p61
      %p64 = scmp.ne.s32.totalorder %s49, %s63
      %p65 = scmp.eq.s32.totalorder %s18, 0
      %p66 = por %p64, %p65
      %s67 = ssub.s32 %s12, %s19
      %p68 = scmp.eq.s32.totalorder %s67, 0
      %s70 = sadd.s32 %s69, 1
      %s71 = scalar_select %p68, %s69, %s70
      %p74 = pneg %p68
      %p75 = scmp.eq.s32.totalorder %s12, 1
      %p76 = por %p74, %p75
      %p77 = scmp.ne.s32.totalorder %s69, %s72
      %p78 = scmp.eq.s32.totalorder %s12, 0
      %p79 = por %p77, %p78
      %p80 = scmp.ne.s32.totalorder %s69, %s72
      %p81 = scmp.eq.s32.totalorder %s17, 1
      %p82 = por %p80, %p81
      %p83 = scmp.ne.s32.totalorder %s72, %s73
      %p84 = scmp.eq.s32.totalorder %s17, 0
      %p85 = por %p83, %p84
      %p86 = scmp.ne.s32.totalorder %s72, %s73
      %p87 = scmp.eq.s32.totalorder %s18, 1
      %p88 = por %p86, %p87
      %p90 = scmp.ne.s32.totalorder %s73, %s89
      %p91 = scmp.eq.s32.totalorder %s18, 0
      %p92 = por %p90, %p91
      %s93 = ssub.s32 %s12, %s19
      %p94 = scmp.eq.s32.totalorder %s93, 0
      %s96 = sadd.s32 %s95, 1
      %s97 = scalar_select %p94, %s95, %s96
      %p100 = pneg %p94
      %p101 = scmp.eq.s32.totalorder %s12, 1
      %p102 = por %p100, %p101
      %p103 = scmp.ne.s32.totalorder %s95, %s98
      %p104 = scmp.eq.s32.totalorder %s12, 0
      %p105 = por %p103, %p104
      %p106 = scmp.ne.s32.totalorder %s95, %s98
      %p107 = scmp.eq.s32.totalorder %s17, 1
      %p108 = por %p106, %p107
      %p109 = scmp.ne.s32.totalorder %s98, %s99
      %p110 = scmp.eq.s32.totalorder %s17, 0
      %p111 = por %p109, %p110
      %p112 = scmp.ne.s32.totalorder %s98, %s99
      %p113 = scmp.eq.s32.totalorder %s18, 1
      %p114 = por %p112, %p113
      %p116 = scmp.ne.s32.totalorder %s99, %s115
      %p117 = scmp.eq.s32.totalorder %s18, 0
      %p118 = por %p116, %p117
      %p119 = scmp.le.s32.totalorder 1, %s12
      %p120 = scmp.lt.s32.totalorder %s12, 3
      %p121 = pnand %p119, %p120
      %p122 = pneg %p121
      // Predicated region
      $region9: #{tpu_custom_call.1} parent=5 // pred_check
        _
      $region10: #{tpu_custom_call.1} parent=5 // pred_check_branch
        %124 = sbr.rel (%p121) target = $region12
      $region11: #{tpu_custom_call.1} parent=5 // pred_region
        %s125 = ssub.s32 %s12, 1
        // Predicated region
        $region13: #{tpu_custom_call.1} parent=11 // pred_check
          %p126 = pneg %p59
        $region14: #{tpu_custom_call.1} parent=11 // pred_check_branch
          %128 = sbr.rel (%p126) target = $region16
        $region15: #{tpu_custom_call.1} parent=11 // pred_region
          _
        $region16: #{tpu_custom_call.1} parent=11 // pred_fallthru
          _
      $region12: #{tpu_custom_call.1} parent=5 // pred_fallthru
        _
      %p129 = scmp.lt.s32.totalorder %s12, 2
      // Predicated region
      $region17: #{tpu_custom_call.1} parent=5 // pred_check
        %p130 = pneg %p129
      $region18: #{tpu_custom_call.1} parent=5 // pred_check_branch
        %132 = sbr.rel (%p130) target = $region20
      $region19: #{tpu_custom_call.1} parent=5 // pred_region
        // Predicated region
        $region21: #{tpu_custom_call.1} parent=19 // pred_check
          %p133 = pneg %p32
        $region22: #{tpu_custom_call.1} parent=19 // pred_check_branch
          %135 = sbr.rel (%p133) target = $region24
        $region23: #{tpu_custom_call.1} parent=19 // pred_region
          %s136 = smul.u32 32, %s12
          %p137 = scmp.lt.s32.totalorder %s136, 63
          %s138 = scalar_select %p137, %s136, 63
          %s139 = smul.addr %s138, 4
          %s140 = scalar_lea.vmem %s0, %s139
          %s141 = smul.u32 32, %s12
        $region24: #{tpu_custom_call.1} parent=19 // pred_fallthru
          _
        // Predicated region
        $region25: #{tpu_custom_call.1} parent=19 // pred_check
          %p142 = pneg %p79
        $region26: #{tpu_custom_call.1} parent=19 // pred_check_branch
          %144 = sbr.rel (%p142) target = $region28
        $region27: #{tpu_custom_call.1} parent=19 // pred_region
          %s145 = smul.u32 32, %s12
          %p146 = scmp.lt.s32.totalorder %s145, 63
          %s147 = scalar_select %p146, %s145, 63
          %s148 = smul.addr %s147, 8
          %s149 = scalar_lea.vmem %s2, %s148
          %s150 = smul.u32 32, %s12
        $region28: #{tpu_custom_call.1} parent=19 // pred_fallthru
          _
      $region20: #{tpu_custom_call.1} parent=5 // pred_fallthru
        _
      %p151 = scmp.le.s32.totalorder 1, %s12
      %p152 = scmp.lt.s32.totalorder %s12, 3
      %p153 = pnand %p151, %p152
      %p154 = pneg %p153
      // Predicated region
      $region29: #{tpu_custom_call.1} parent=5 // pred_check
        _
      $region30: #{tpu_custom_call.1} parent=5 // pred_check_branch
        %156 = sbr.rel (%p153) target = $region32
      $region31: #{tpu_custom_call.1} parent=5 // pred_region
        %s157 = ssub.s32 %s12, 1
        %s158 = smul.u32 32, %s17
        %p159 = scmp.lt.s32.totalorder %s158, 63
        %s160 = scalar_select %p159, %s158, 63
        %s161 = smul.addr %s160, 4
        %s162 = scalar_lea.vmem %s0, %s161
        %p163 = pneg %p38
        %p164 = pneg %p35
        %p165 = pneg %p59
        %p166 = pneg %p56
        %s167 = smul.u32 32, %s17
        %p168 = scmp.lt.s32.totalorder %s167, 63
        %s169 = scalar_select %p168, %s167, 63
        %s170 = smul.addr %s169, 8
        %s171 = scalar_lea.vmem %s2, %s170
        %p172 = pneg %p85
        %p173 = pneg %p82
        %p174 = pneg %p111
        %p175 = pneg %p108
        %s176 = sand.u32 %s98, 1
        %s177 = scalar_lea.sflag [#allocation3], %s176
        %s178 = sand.u32 %s98, 1
        %s179 = smul.addr %s178, 128
        %s180 = scalar_lea.vmem [#allocation2], %s179
        %s181 = smul.u32 32, %s17
        %p182 = scmp.lt.s32.totalorder %s181, 63
        %s183 = scalar_select %p182, %s181, 63
        %s184 = smul.addr %s183, 4
        %s185 = scalar_lea.vmem %s0, %s184
        %s186 = smul.u32 32, %s17
        %s187 = smul.u32 32, %s17
        %p188 = scmp.lt.s32.totalorder %s187, 63
        %s189 = scalar_select %p188, %s187, 63
        %s190 = smul.addr %s189, 8
        %s191 = scalar_lea.vmem %s2, %s190
        %s192 = smul.u32 32, %s17
        %s193 = smul.u32 32, %s17
        %v194 = vld [vmem:[%s185] sm:$0xf]
        %v195 = vld [vmem:[%s185 + $0x4] sm:$0xf]
        %v196 = vld [vmem:[%s185 + $0x8] sm:$0xf]
        %v197 = vld [vmem:[%s185 + $0xc] sm:$0xf]
        %v198 = vld [vmem:[%s185 + $0x10] sm:$0xf]
        %v199 = vld [vmem:[%s185 + $0x14] sm:$0xf]
        %v200 = vld [vmem:[%s185 + $0x18] sm:$0xf]
        %v201 = vld [vmem:[%s185 + $0x1c] sm:$0xf]
        %v202 = vld [vmem:[%s185 + $0x20] sm:$0xf]
        %v203 = vld [vmem:[%s185 + $0x24] sm:$0xf]
        %v204 = vld [vmem:[%s185 + $0x28] sm:$0xf]
        %v205 = vld [vmem:[%s185 + $0x2c] sm:$0xf]
        %v206 = vld [vmem:[%s185 + $0x30] sm:$0xf]
        %v207 = vld [vmem:[%s185 + $0x34] sm:$0xf]
        %v208 = vld [vmem:[%s185 + $0x38] sm:$0xf]
        %v209 = vld [vmem:[%s185 + $0x3c] sm:$0xf]
        %v210 = vld [vmem:[%s185 + $0x40] sm:$0xf]
        %v211 = vld [vmem:[%s185 + $0x44] sm:$0xf]
        %v212 = vld [vmem:[%s185 + $0x48] sm:$0xf]
        %v213 = vld [vmem:[%s185 + $0x4c] sm:$0xf]
        %v214 = vld [vmem:[%s185 + $0x50] sm:$0xf]
        %v215 = vld [vmem:[%s185 + $0x54] sm:$0xf]
        %v216 = vld [vmem:[%s185 + $0x58] sm:$0xf]
        %v217 = vld [vmem:[%s185 + $0x5c] sm:$0xf]
        %v218 = vld [vmem:[%s185 + $0x60] sm:$0xf]
        %v219 = vld [vmem:[%s185 + $0x64] sm:$0xf]
        %v220 = vld [vmem:[%s185 + $0x68] sm:$0xf]
        %v221 = vld [vmem:[%s185 + $0x6c] sm:$0xf]
        %v222 = vld [vmem:[%s185 + $0x70] sm:$0xf]
        %v223 = vld [vmem:[%s185 + $0x74] sm:$0xf]
        %v224 = vld [vmem:[%s185 + $0x78] sm:$0xf]
        %v225 = vld [vmem:[%s185 + $0x7c] sm:$0xf]
        %v226 = vld [vmem:[%s1] sm:$0xf]
        %v227 = vld [vmem:[%s1 + $0x4] sm:$0xf]
        %v228 = vld [vmem:[%s1 + $0x8] sm:$0xf]
        %v229 = vld [vmem:[%s1 + $0xc] sm:$0xf]
        %v230 = vld [vmem:[%s1 + $0x10] sm:$0xf]
        %v231 = vld [vmem:[%s1 + $0x14] sm:$0xf]
        %v232 = vld [vmem:[%s1 + $0x18] sm:$0xf]
        %v233 = vld [vmem:[%s1 + $0x1c] sm:$0xf]
        %v234 = vld [vmem:[%s1 + $0x20] sm:$0xf]
        %v235 = vld [vmem:[%s1 + $0x24] sm:$0xf]
        %v236 = vld [vmem:[%s1 + $0x28] sm:$0xf]
        %v237 = vld [vmem:[%s1 + $0x2c] sm:$0xf]
        %v238 = vld [vmem:[%s1 + $0x30] sm:$0xf]
        %v239 = vld [vmem:[%s1 + $0x34] sm:$0xf]
        %v240 = vld [vmem:[%s1 + $0x38] sm:$0xf]
        %v241 = vld [vmem:[%s1 + $0x3c] sm:$0xf]
        %v274 = vunpack.c.l.b16 %v194
        %v275 = vunpack.c.l.b16 %v195
        %v276 = vunpack.c.l.b16 %v196
        %v277 = vunpack.c.l.b16 %v197
        %v278 = vunpack.c.l.b16 %v198
        %v279 = vunpack.c.l.b16 %v199
        %v280 = vunpack.c.l.b16 %v200
        %v281 = vunpack.c.l.b16 %v201
        %v282 = vunpack.c.l.b16 %v202
        %v283 = vunpack.c.l.b16 %v203
        %v284 = vunpack.c.l.b16 %v204
        %v285 = vunpack.c.l.b16 %v205
        %v286 = vunpack.c.l.b16 %v206
        %v287 = vunpack.c.l.b16 %v207
        %v288 = vunpack.c.l.b16 %v208
        %v289 = vunpack.c.l.b16 %v209
        %v290 = vunpack.c.l.b16 %v210
        %v291 = vunpack.c.l.b16 %v211
        %v292 = vunpack.c.l.b16 %v212
        %v293 = vunpack.c.l.b16 %v213
        %v294 = vunpack.c.l.b16 %v214
        %v295 = vunpack.c.l.b16 %v215
        %v296 = vunpack.c.l.b16 %v216
        %v297 = vunpack.c.l.b16 %v217
        %v298 = vunpack.c.l.b16 %v218
        %v299 = vunpack.c.l.b16 %v219
        %v300 = vunpack.c.l.b16 %v220
        %v301 = vunpack.c.l.b16 %v221
        %v302 = vunpack.c.l.b16 %v222
        %v303 = vunpack.c.l.b16 %v223
        %v304 = vunpack.c.l.b16 %v224
        %v305 = vunpack.c.l.b16 %v225
        %v306 = vpack.c.b16 %v275, %v274
        %v307 = vpack.c.b16 %v277, %v276
        %v308 = vpack.c.b16 %v279, %v278
        %v309 = vpack.c.b16 %v281, %v280
        %v310 = vpack.c.b16 %v283, %v282
        %v311 = vpack.c.b16 %v285, %v284
        %v312 = vpack.c.b16 %v287, %v286
        %v313 = vpack.c.b16 %v289, %v288
        %v314 = vpack.c.b16 %v291, %v290
        %v315 = vpack.c.b16 %v293, %v292
        %v316 = vpack.c.b16 %v295, %v294
        %v317 = vpack.c.b16 %v297, %v296
        %v318 = vpack.c.b16 %v299, %v298
        %v319 = vpack.c.b16 %v301, %v300
        %v320 = vpack.c.b16 %v303, %v302
        %v321 = vpack.c.b16 %v305, %v304
        %v354 = vunpack.c.l.b16 %v226
        %v355 = vunpack.c.l.b16 %v227
        %v356 = vunpack.c.l.b16 %v228
        %v357 = vunpack.c.l.b16 %v229
        %v358 = vunpack.c.l.b16 %v230
        %v359 = vunpack.c.l.b16 %v231
        %v360 = vunpack.c.l.b16 %v232
        %v361 = vunpack.c.l.b16 %v233
        %v362 = vunpack.c.l.b16 %v234
        %v363 = vunpack.c.l.b16 %v235
        %v364 = vunpack.c.l.b16 %v236
        %v365 = vunpack.c.l.b16 %v237
        %v366 = vunpack.c.l.b16 %v238
        %v367 = vunpack.c.l.b16 %v239
        %v368 = vunpack.c.l.b16 %v240
        %v369 = vunpack.c.l.b16 %v241
        %v370 = vpack.c.b16 %v355, %v354
        %v371 = vpack.c.b16 %v357, %v356
        %v372 = vpack.c.b16 %v359, %v358
        %v373 = vpack.c.b16 %v361, %v360
        %v374 = vpack.c.b16 %v363, %v362
        %v375 = vpack.c.b16 %v365, %v364
        %v376 = vpack.c.b16 %v367, %v366
        %v377 = vpack.c.b16 %v369, %v368
        %386 = vmatpush.bf16.msra.mxu0 %v377
        %387 = vmatpush.bf16.msra.mxu0 %v376
        %388 = vmatpush.bf16.msra.mxu0 %v375
        %389 = vmatpush.bf16.msra.mxu0 %v374
        %390 = vmatpush.bf16.msra.mxu0 %v373
        %391 = vmatpush.bf16.msra.mxu0 %v372
        %392 = vmatpush.bf16.msra.mxu0 %v371
        %393 = vmatpush.bf16.msra.mxu0 %v370
        %394 = vmatmul.bf16.gmra.mxu0 %v306
        %v395 = vpop.f32.mrf.mxu0
        %v396 = vadd.f32 0.0, %v395
        %v397 = vpop.f32.mrf.mxu0
        %v398 = vadd.f32 0.0, %v397
        %399 = vmatmul.bf16.gmra.mxu0 %v307
        %v400 = vpop.f32.mrf.mxu0
        %v401 = vadd.f32 0.0, %v400
        %v402 = vpop.f32.mrf.mxu0
        %v403 = vadd.f32 0.0, %v402
        %404 = vmatmul.bf16.gmra.mxu0 %v308
        %v405 = vpop.f32.mrf.mxu0
        %v406 = vadd.f32 0.0, %v405
        %v407 = vpop.f32.mrf.mxu0
        %v408 = vadd.f32 0.0, %v407
        %409 = vmatmul.bf16.gmra.mxu0 %v309
        %v410 = vpop.f32.mrf.mxu0
        %v411 = vadd.f32 0.0, %v410
        %v412 = vpop.f32.mrf.mxu0
        %v413 = vadd.f32 0.0, %v412
        %414 = vmatmul.bf16.gmra.mxu0 %v310
        %v415 = vpop.f32.mrf.mxu0
        %v416 = vadd.f32 0.0, %v415
        %v417 = vpop.f32.mrf.mxu0
        %v418 = vadd.f32 0.0, %v417
        %419 = vmatmul.bf16.gmra.mxu0 %v311
        %v420 = vpop.f32.mrf.mxu0
        %v421 = vadd.f32 0.0, %v420
        %v422 = vpop.f32.mrf.mxu0
        %v423 = vadd.f32 0.0, %v422
        %424 = vmatmul.bf16.gmra.mxu0 %v312
        %v425 = vpop.f32.mrf.mxu0
        %v426 = vadd.f32 0.0, %v425
        %v427 = vpop.f32.mrf.mxu0
        %v428 = vadd.f32 0.0, %v427
        %429 = vmatmul.bf16.gmra.mxu0 %v313
        %v430 = vpop.f32.mrf.mxu0
        %v431 = vadd.f32 0.0, %v430
        %v432 = vpop.f32.mrf.mxu0
        %v433 = vadd.f32 0.0, %v432
        %434 = vmatmul.bf16.gmra.mxu0 %v314
        %v435 = vpop.f32.mrf.mxu0
        %v436 = vadd.f32 0.0, %v435
        %v437 = vpop.f32.mrf.mxu0
        %v438 = vadd.f32 0.0, %v437
        %439 = vmatmul.bf16.gmra.mxu0 %v315
        %v440 = vpop.f32.mrf.mxu0
        %v441 = vadd.f32 0.0, %v440
        %v442 = vpop.f32.mrf.mxu0
        %v443 = vadd.f32 0.0, %v442
        %444 = vmatmul.bf16.gmra.mxu0 %v316
        %v445 = vpop.f32.mrf.mxu0
        %v446 = vadd.f32 0.0, %v445
        %v447 = vpop.f32.mrf.mxu0
        %v448 = vadd.f32 0.0, %v447
        %449 = vmatmul.bf16.gmra.mxu0 %v317
        %v450 = vpop.f32.mrf.mxu0
        %v451 = vadd.f32 0.0, %v450
        %v452 = vpop.f32.mrf.mxu0
        %v453 = vadd.f32 0.0, %v452
        %454 = vmatmul.bf16.gmra.mxu0 %v318
        %v455 = vpop.f32.mrf.mxu0
        %v456 = vadd.f32 0.0, %v455
        %v457 = vpop.f32.mrf.mxu0
        %v458 = vadd.f32 0.0, %v457
        %459 = vmatmul.bf16.gmra.mxu0 %v319
        %v460 = vpop.f32.mrf.mxu0
        %v461 = vadd.f32 0.0, %v460
        %v462 = vpop.f32.mrf.mxu0
        %v463 = vadd.f32 0.0, %v462
        %464 = vmatmul.bf16.gmra.mxu0 %v320
        %v465 = vpop.f32.mrf.mxu0
        %v466 = vadd.f32 0.0, %v465
        %v467 = vpop.f32.mrf.mxu0
        %v468 = vadd.f32 0.0, %v467
        %469 = vmatmul.bf16.gmra.mxu0 %v321
        %v470 = vpop.f32.mrf.mxu0
        %v471 = vadd.f32 0.0, %v470
        %v472 = vpop.f32.mrf.mxu0
        %v473 = vadd.f32 0.0, %v472
        %474 = vdwg.mxu0
        %v475 = vld [vmem:[%s191] sm:$0xff]
        %v476 = vld [vmem:[%s191 + $0x8] sm:$0xff]
        %v477 = vld [vmem:[%s191 + $0x10] sm:$0xff]
        %v478 = vld [vmem:[%s191 + $0x18] sm:$0xff]
        %v479 = vld [vmem:[%s191 + $0x20] sm:$0xff]
        %v480 = vld [vmem:[%s191 + $0x28] sm:$0xff]
        %v481 = vld [vmem:[%s191 + $0x30] sm:$0xff]
        %v482 = vld [vmem:[%s191 + $0x38] sm:$0xff]
        %v483 = vld [vmem:[%s191 + $0x40] sm:$0xff]
        %v484 = vld [vmem:[%s191 + $0x48] sm:$0xff]
        %v485 = vld [vmem:[%s191 + $0x50] sm:$0xff]
        %v486 = vld [vmem:[%s191 + $0x58] sm:$0xff]
        %v487 = vld [vmem:[%s191 + $0x60] sm:$0xff]
        %v488 = vld [vmem:[%s191 + $0x68] sm:$0xff]
        %v489 = vld [vmem:[%s191 + $0x70] sm:$0xff]
        %v490 = vld [vmem:[%s191 + $0x78] sm:$0xff]
        %v491 = vld [vmem:[%s191 + $0x80] sm:$0xff]
        %v492 = vld [vmem:[%s191 + $0x88] sm:$0xff]
        %v493 = vld [vmem:[%s191 + $0x90] sm:$0xff]
        %v494 = vld [vmem:[%s191 + $0x98] sm:$0xff]
        %v495 = vld [vmem:[%s191 + $0xa0] sm:$0xff]
        %v496 = vld [vmem:[%s191 + $0xa8] sm:$0xff]
        %v497 = vld [vmem:[%s191 + $0xb0] sm:$0xff]
        %v498 = vld [vmem:[%s191 + $0xb8] sm:$0xff]
        %v499 = vld [vmem:[%s191 + $0xc0] sm:$0xff]
        %v500 = vld [vmem:[%s191 + $0xc8] sm:$0xff]
        %v501 = vld [vmem:[%s191 + $0xd0] sm:$0xff]
        %v502 = vld [vmem:[%s191 + $0xd8] sm:$0xff]
        %v503 = vld [vmem:[%s191 + $0xe0] sm:$0xff]
        %v504 = vld [vmem:[%s191 + $0xe8] sm:$0xff]
        %v505 = vld [vmem:[%s191 + $0xf0] sm:$0xff]
        %v506 = vld [vmem:[%s191 + $0xf8] sm:$0xff]
        %508 = vset.pattern.permute.xlu0 0
        %509 = vperm.xlu0 %508, %v475
        %v510 = vpop.permute.xlu0 %509
        %513 = vset.pattern.permute.xlu0 0
        %514 = vperm.xlu0 %513, %v476
        %v515 = vpop.permute.xlu0 %514
        %518 = vset.pattern.permute.xlu0 0
        %519 = vperm.xlu0 %518, %v477
        %v520 = vpop.permute.xlu0 %519
        %523 = vset.pattern.permute.xlu0 0
        %524 = vperm.xlu0 %523, %v478
        %v525 = vpop.permute.xlu0 %524
        %528 = vset.pattern.permute.xlu0 0
        %529 = vperm.xlu0 %528, %v479
        %v530 = vpop.permute.xlu0 %529
        %533 = vset.pattern.permute.xlu0 0
        %534 = vperm.xlu0 %533, %v480
        %v535 = vpop.permute.xlu0 %534
        %538 = vset.pattern.permute.xlu0 0
        %539 = vperm.xlu0 %538, %v481
        %v540 = vpop.permute.xlu0 %539
        %543 = vset.pattern.permute.xlu0 0
        %544 = vperm.xlu0 %543, %v482
        %v545 = vpop.permute.xlu0 %544
        %548 = vset.pattern.permute.xlu0 0
        %549 = vperm.xlu0 %548, %v483
        %v550 = vpop.permute.xlu0 %549
        %553 = vset.pattern.permute.xlu0 0
        %554 = vperm.xlu0 %553, %v484
        %v555 = vpop.permute.xlu0 %554
        %558 = vset.pattern.permute.xlu0 0
        %559 = vperm.xlu0 %558, %v485
        %v560 = vpop.permute.xlu0 %559
        %563 = vset.pattern.permute.xlu0 0
        %564 = vperm.xlu0 %563, %v486
        %v565 = vpop.permute.xlu0 %564
        %568 = vset.pattern.permute.xlu0 0
        %569 = vperm.xlu0 %568, %v487
        %v570 = vpop.permute.xlu0 %569
        %573 = vset.pattern.permute.xlu0 0
        %574 = vperm.xlu0 %573, %v488
        %v575 = vpop.permute.xlu0 %574
        %578 = vset.pattern.permute.xlu0 0
        %579 = vperm.xlu0 %578, %v489
        %v580 = vpop.permute.xlu0 %579
        %583 = vset.pattern.permute.xlu0 0
        %584 = vperm.xlu0 %583, %v490
        %v585 = vpop.permute.xlu0 %584
        %588 = vset.pattern.permute.xlu0 0
        %589 = vperm.xlu0 %588, %v491
        %v590 = vpop.permute.xlu0 %589
        %593 = vset.pattern.permute.xlu0 0
        %594 = vperm.xlu0 %593, %v492
        %v595 = vpop.permute.xlu0 %594
        %598 = vset.pattern.permute.xlu0 0
        %599 = vperm.xlu0 %598, %v493
        %v600 = vpop.permute.xlu0 %599
        %603 = vset.pattern.permute.xlu0 0
        %604 = vperm.xlu0 %603, %v494
        %v605 = vpop.permute.xlu0 %604
        %608 = vset.pattern.permute.xlu0 0
        %609 = vperm.xlu0 %608, %v495
        %v610 = vpop.permute.xlu0 %609
        %613 = vset.pattern.permute.xlu0 0
        %614 = vperm.xlu0 %613, %v496
        %v615 = vpop.permute.xlu0 %614
        %618 = vset.pattern.permute.xlu0 0
        %619 = vperm.xlu0 %618, %v497
        %v620 = vpop.permute.xlu0 %619
        %623 = vset.pattern.permute.xlu0 0
        %624 = vperm.xlu0 %623, %v498
        %v625 = vpop.permute.xlu0 %624
        %628 = vset.pattern.permute.xlu0 0
        %629 = vperm.xlu0 %628, %v499
        %v630 = vpop.permute.xlu0 %629
        %633 = vset.pattern.permute.xlu0 0
        %634 = vperm.xlu0 %633, %v500
        %v635 = vpop.permute.xlu0 %634
        %638 = vset.pattern.permute.xlu0 0
        %639 = vperm.xlu0 %638, %v501
        %v640 = vpop.permute.xlu0 %639
        %643 = vset.pattern.permute.xlu0 0
        %644 = vperm.xlu0 %643, %v502
        %v645 = vpop.permute.xlu0 %644
        %648 = vset.pattern.permute.xlu0 0
        %649 = vperm.xlu0 %648, %v503
        %v650 = vpop.permute.xlu0 %649
        %653 = vset.pattern.permute.xlu0 0
        %654 = vperm.xlu0 %653, %v504
        %v655 = vpop.permute.xlu0 %654
        %658 = vset.pattern.permute.xlu0 0
        %659 = vperm.xlu0 %658, %v505
        %v660 = vpop.permute.xlu0 %659
        %663 = vset.pattern.permute.xlu0 0
        %664 = vperm.xlu0 %663, %v506
        %v665 = vpop.permute.xlu0 %664
        %v667 = vmul.f32 %v510, %v396
        %v668 = vmul.f32 %v515, %v398
        %v669 = vmul.f32 %v520, %v401
        %v670 = vmul.f32 %v525, %v403
        %v671 = vmul.f32 %v530, %v406
        %v672 = vmul.f32 %v535, %v408
        %v673 = vmul.f32 %v540, %v411
        %v674 = vmul.f32 %v545, %v413
        %v675 = vmul.f32 %v550, %v416
        %v676 = vmul.f32 %v555, %v418
        %v677 = vmul.f32 %v560, %v421
        %v678 = vmul.f32 %v565, %v423
        %v679 = vmul.f32 %v570, %v426
        %v680 = vmul.f32 %v575, %v428
        %v681 = vmul.f32 %v580, %v431
        %v682 = vmul.f32 %v585, %v433
        %v683 = vmul.f32 %v590, %v436
        %v684 = vmul.f32 %v595, %v438
        %v685 = vmul.f32 %v600, %v441
        %v686 = vmul.f32 %v605, %v443
        %v687 = vmul.f32 %v610, %v446
        %v688 = vmul.f32 %v615, %v448
        %v689 = vmul.f32 %v620, %v451
        %v690 = vmul.f32 %v625, %v453
        %v691 = vmul.f32 %v630, %v456
        %v692 = vmul.f32 %v635, %v458
        %v693 = vmul.f32 %v640, %v461
        %v694 = vmul.f32 %v645, %v463
        %v695 = vmul.f32 %v650, %v466
        %v696 = vmul.f32 %v655, %v468
        %v697 = vmul.f32 %v660, %v471
        %v698 = vmul.f32 %v665, %v473
        %v699 = vpack.c.bf16 %v667, %v667
        %v700 = vpack.c.bf16 %v668, %v668
        %v701 = vpack.c.bf16 %v669, %v669
        %v702 = vpack.c.bf16 %v670, %v670
        %v703 = vpack.c.bf16 %v671, %v671
        %v704 = vpack.c.bf16 %v672, %v672
        %v705 = vpack.c.bf16 %v673, %v673
        %v706 = vpack.c.bf16 %v674, %v674
        %v707 = vpack.c.bf16 %v675, %v675
        %v708 = vpack.c.bf16 %v676, %v676
        %v709 = vpack.c.bf16 %v677, %v677
        %v710 = vpack.c.bf16 %v678, %v678
        %v711 = vpack.c.bf16 %v679, %v679
        %v712 = vpack.c.bf16 %v680, %v680
        %v713 = vpack.c.bf16 %v681, %v681
        %v714 = vpack.c.bf16 %v682, %v682
        %v715 = vpack.c.bf16 %v683, %v683
        %v716 = vpack.c.bf16 %v684, %v684
        %v717 = vpack.c.bf16 %v685, %v685
        %v718 = vpack.c.bf16 %v686, %v686
        %v719 = vpack.c.bf16 %v687, %v687
        %v720 = vpack.c.bf16 %v688, %v688
        %v721 = vpack.c.bf16 %v689, %v689
        %v722 = vpack.c.bf16 %v690, %v690
        %v723 = vpack.c.bf16 %v691, %v691
        %v724 = vpack.c.bf16 %v692, %v692
        %v725 = vpack.c.bf16 %v693, %v693
        %v726 = vpack.c.bf16 %v694, %v694
        %v727 = vpack.c.bf16 %v695, %v695
        %v728 = vpack.c.bf16 %v696, %v696
        %v729 = vpack.c.bf16 %v697, %v697
        %v730 = vpack.c.bf16 %v698, %v698
        %731 = vst [vmem:[%s180] sm:$0xf] %v699
        %732 = vst [vmem:[%s180 + $0x4] sm:$0xf] %v700
        %733 = vst [vmem:[%s180 + $0x8] sm:$0xf] %v701
        %734 = vst [vmem:[%s180 + $0xc] sm:$0xf] %v702
        %735 = vst [vmem:[%s180 + $0x10] sm:$0xf] %v703
        %736 = vst [vmem:[%s180 + $0x14] sm:$0xf] %v704
        %737 = vst [vmem:[%s180 + $0x18] sm:$0xf] %v705
        %738 = vst [vmem:[%s180 + $0x1c] sm:$0xf] %v706
        %739 = vst [vmem:[%s180 + $0x20] sm:$0xf] %v707
        %740 = vst [vmem:[%s180 + $0x24] sm:$0xf] %v708
        %741 = vst [vmem:[%s180 + $0x28] sm:$0xf] %v709
        %742 = vst [vmem:[%s180 + $0x2c] sm:$0xf] %v710
        %743 = vst [vmem:[%s180 + $0x30] sm:$0xf] %v711
        %744 = vst [vmem:[%s180 + $0x34] sm:$0xf] %v712
        %745 = vst [vmem:[%s180 + $0x38] sm:$0xf] %v713
        %746 = vst [vmem:[%s180 + $0x3c] sm:$0xf] %v714
        %747 = vst [vmem:[%s180 + $0x40] sm:$0xf] %v715
        %748 = vst [vmem:[%s180 + $0x44] sm:$0xf] %v716
        %749 = vst [vmem:[%s180 + $0x48] sm:$0xf] %v717
        %750 = vst [vmem:[%s180 + $0x4c] sm:$0xf] %v718
        %751 = vst [vmem:[%s180 + $0x50] sm:$0xf] %v719
        %752 = vst [vmem:[%s180 + $0x54] sm:$0xf] %v720
        %753 = vst [vmem:[%s180 + $0x58] sm:$0xf] %v721
        %754 = vst [vmem:[%s180 + $0x5c] sm:$0xf] %v722
        %755 = vst [vmem:[%s180 + $0x60] sm:$0xf] %v723
        %756 = vst [vmem:[%s180 + $0x64] sm:$0xf] %v724
        %757 = vst [vmem:[%s180 + $0x68] sm:$0xf] %v725
        %758 = vst [vmem:[%s180 + $0x6c] sm:$0xf] %v726
        %759 = vst [vmem:[%s180 + $0x70] sm:$0xf] %v727
        %760 = vst [vmem:[%s180 + $0x74] sm:$0xf] %v728
        %761 = vst [vmem:[%s180 + $0x78] sm:$0xf] %v729
        %762 = vst [vmem:[%s180 + $0x7c] sm:$0xf] %v730
        %s763 = sand.u32 %s98, 1
        %s764 = scalar_lea.sflag [#allocation3], %s763
        %s765 = sand.u32 %s98, 1
        %s766 = smul.addr %s765, 128
        %s767 = scalar_lea.vmem [#allocation2], %s766
        // Predicated region
        $region33: #{tpu_custom_call.1} parent=31 // pred_check
          %p768 = pneg %p108
        $region34: #{tpu_custom_call.1} parent=31 // pred_check_branch
          %770 = sbr.rel (%p768) target = $region36
        $region35: #{tpu_custom_call.1} parent=31 // pred_region
          %s771 = smul.u32 32, %s17
          %773 = vsyncadd %s764, 0
          %s774 = smul.addr %s771, 4
          %s775 = scalar_lea.hbm %s3, %s774
          %s776 = sshll.u32 %s767, 4
          %s777 = int_to_ptr.vmem [resolvable:$true] %s776
          %s778 = sshll.u32 %s775, 4
          %s779 = int_to_ptr.hbm [resolvable:$true] %s778
          %784 = dma.vmem_to_hbm [thread:$0]  %s777, 2048, %s779, %s764, 64, 64, 4
        $region36: #{tpu_custom_call.1} parent=31 // pred_fallthru
          _
      $region32: #{tpu_custom_call.1} parent=5 // pred_fallthru
        _
      %p785 = scmp.le.s32.totalorder 2, %s12
      // Predicated region
      $region37: #{tpu_custom_call.1} parent=5 // pred_check
        %p786 = pneg %p785
      $region38: #{tpu_custom_call.1} parent=5 // pred_check_branch
        %788 = sbr.rel (%p786) target = $region40
      $region39: #{tpu_custom_call.1} parent=5 // pred_region
        %s789 = ssub.s32 %s12, 2
        // Predicated region
        $region41: #{tpu_custom_call.1} parent=39 // pred_check
          %p790 = pneg %p114
        $region42: #{tpu_custom_call.1} parent=39 // pred_check_branch
          %792 = sbr.rel (%p790) target = $region44
        $region43: #{tpu_custom_call.1} parent=39 // pred_region
          %s793 = sand.u32 %s99, 1
          %s794 = scalar_lea.sflag [#allocation3], %s793
          %s795 = sand.u32 %s99, 1
          %s796 = smul.addr %s795, 128
          %s797 = scalar_lea.vmem [#allocation2], %s796
          %799 = dma.done %s794, 2048
        $region44: #{tpu_custom_call.1} parent=39 // pred_fallthru
          _
      $region40: #{tpu_custom_call.1} parent=5 // pred_fallthru
        _
    $region6: #{tpu_custom_call.1} parent=1 // loop_footer
      %s16 = sadd.s32 1, %s12
    $region7: #{tpu_custom_call.1} parent=1 // loop_footer_branch
      %11 = sbr.rel target = $region3
    $region8: #{tpu_custom_call.1} parent=1 // loop_exit
      _
    %800 = vsyncpa [#allocation3], 1
    %s801 = scalar_lea.sflag [#allocation3], 1
    %802 = vsyncpa %s801, 1

</llo_original>
